<compile_context>
chip_gen: v5e
topology: v5e:2x2
jax: 0.10.0
libtpu: 0.0.40
codegen_flags: <defaults>
</compile_context>

<pallas_src>
import functools

import jax
import jax.numpy as jnp
from jax import lax
from jax.experimental import pallas as pl
from jax.experimental.pallas import tpu as pltpu

# float32 keeps tight numerical parity with the PyTorch reference at the toy
# shapes; set to jnp.bfloat16 for ~2x MXU throughput / half the weight DMA
# bytes on v5e/v6e/v7x at production shapes (loosens tolerance slightly).
MATMUL_DTYPE = jnp.float32
NEG_INF = -1000000000.0


# ---------------------------------------------------------------------------
# Fused kernel: K projection -> masked softmax attention -> output projection
# One grid step == one batch element.
# ---------------------------------------------------------------------------
def _fused_attention_kernel(x_ref, wk_ref, bk_ref, wp_ref, bp_ref, o_ref,
                            *, L, H, hd):
    # x_ref : (L, D)       rows of this batch element (lane-dense)
    # wk_ref: (H, D, hd)   K slice of c_attn weight, pre-split per head
    # bk_ref: (H, 1, hd)   K slice of c_attn bias, per head
    # wp_ref: (H, hd, D)   c_proj weight split along its input dim per head
    # bp_ref: (1, D)       c_proj bias
    # o_ref : (L, D)
    x = x_ref[...].astype(MATMUL_DTYPE)                        # (L, D)

    # K projection directly into a head-batched (H, L, hd) layout: one batched
    # MXU einsum, no per-head lane slicing, no reshape/transpose afterwards.
    xb = jnp.broadcast_to(x[None], (H,) + x.shape)             # (H, L, D)
    kh = jnp.einsum("hld,hdf->hlf", xb,
                    wk_ref[...].astype(MATMUL_DTYPE),
                    preferred_element_type=jnp.float32)
    kh = kh + bk_ref[...]                                      # (H, L, hd) f32

    # Scores with 1/sqrt(hd) folded into the lhs operand (q = k).
    scale = 1.0 / (float(hd) ** 0.5)
    kh_q = (kh * scale).astype(MATMUL_DTYPE)
    s = jnp.einsum("hqd,hkd->hqk", kh_q, kh.astype(MATMUL_DTYPE),
                   preferred_element_type=jnp.float32)         # (H, L, L)

    # Causal mask generated in-kernel (equivalent to masked_fill(tril==0,-1e9)).
    row = lax.broadcasted_iota(jnp.int32, (L, L), 0)
    col = lax.broadcasted_iota(jnp.int32, (L, L), 1)
    s = jnp.where((col <= row)[None, :, :], s, NEG_INF)

    # Softmax over the key axis, all elementwise math in f32.
    s = s - jnp.max(s, axis=-1, keepdims=True)
    p = jnp.exp(s)
    p = p * pl.reciprocal(jnp.sum(p, axis=-1, keepdims=True), approx=True)

    # P @ V (v = k per the reference), still head-batched.
    attn = jnp.einsum("hqk,hkd->hqd", p.astype(MATMUL_DTYPE),
                      kh.astype(MATMUL_DTYPE),
                      preferred_element_type=jnp.float32)      # (H, L, hd)

    # Head merge fused into the output projection: per-head batched matmul
    # against the matching input-slice of w_proj, then a cheap sum over the
    # leading head axis. No concatenate, no transpose.
    proj = jnp.einsum("hqd,hdf->hqf", attn.astype(MATMUL_DTYPE),
                      wp_ref[...].astype(MATMUL_DTYPE),
                      preferred_element_type=jnp.float32)      # (H, L, D)
    o_ref[...] = jnp.sum(proj, axis=0) + bp_ref[...]           # (L, D)


# ---------------------------------------------------------------------------
# Wrapper
# ---------------------------------------------------------------------------
def attention_forward(x, params, n_heads):
    """Full forward pass of the Attention module as one fused Pallas kernel."""
    B, L, D = x.shape
    H = n_heads
    hd = D // H

    # Only the K third of c_attn is ever used (q = v = k in the reference).
    w_k = params["w_attn"][:, D:2 * D]                     # (D, D)
    b_k = params["b_attn"][D:2 * D]                        # (D,)
    # Pre-split per head in the wrapper so the kernel never slices 8-lane
    # head columns out of a 128-lane vreg.
    w_k3 = w_k.reshape(D, H, hd).transpose(1, 0, 2)        # (H, D, hd)
    b_k3 = b_k.reshape(1, H, hd).transpose(1, 0, 2)        # (H, 1, hd)
    # c_proj weight split along its *input* dim: out = sum_h attn_h @ w_p3[h].
    w_p3 = params["w_proj"].reshape(H, hd, D)              # (H, hd, D)
    b_p = params["b_proj"].reshape(1, D)                   # (1, D)

    x2d = x.reshape(B * L, D)
    kernel = functools.partial(_fused_attention_kernel, L=L, H=H, hd=hd)

    out2d = pl.pallas_call(
        kernel,
        out_shape=jax.ShapeDtypeStruct((B * L, D), jnp.float32),
        grid_spec=pl.GridSpec(
            grid=(B,),
            in_specs=[
                pl.BlockSpec((L, D), lambda b: (b, 0)),          # x rows of b
                pl.BlockSpec((H, D, hd), lambda b: (0, 0, 0)),   # w_k (resident)
                pl.BlockSpec((H, 1, hd), lambda b: (0, 0, 0)),   # b_k (resident)
                pl.BlockSpec((H, hd, D), lambda b: (0, 0, 0)),   # w_proj (resident)
                pl.BlockSpec((1, D), lambda b: (0, 0)),          # b_proj (resident)
            ],
            out_specs=pl.BlockSpec((L, D), lambda b: (b, 0)),
        ),
        compiler_params=pltpu.CompilerParams(
            dimension_semantics=("parallel",)),   # batch axis -> v7x megacore
    )(x2d, w_k3, b_k3, w_p3, b_p)

    return out2d.reshape(B, L, D)


# ---------------------------------------------------------------------------
# Deterministic parameter init (PyTorch nn.Linear-style uniform bounds)
# ---------------------------------------------------------------------------
def init_params(key, d_model):
    k1, k2, k3, k4 = jax.random.split(key, 4)
    bound = 1.0 / (d_model ** 0.5)
    # Stored already transposed: w has shape (Din, Dout) so that y = x @ w + b.
    return {
        "w_attn": jax.random.uniform(k1, (d_model, 3 * d_model), jnp.float32,
                                     -bound, bound),
        "b_attn": jax.random.uniform(k2, (3 * d_model,), jnp.float32,
                                     -bound, bound),
        "w_proj": jax.random.uniform(k3, (d_model, d_model), jnp.float32,
                                     -bound, bound),
        "b_proj": jax.random.uniform(k4, (d_model,), jnp.float32,
                                     -bound, bound),
    }


def reference_forward(x, params, n_heads, mask):
    """Pure-JAX reference reproducing the PyTorch module semantics."""
    B, L, D = x.shape
    hd = D // n_heads
    qkv = x @ params["w_attn"] + params["b_attn"]
    k = qkv[:, :, D:2 * D]
    kh = k.reshape(B, L, n_heads, hd).transpose(0, 2, 1, 3)
    att = (kh @ jnp.swapaxes(kh, 2, 3)) / (hd ** 0.5)
    att = jnp.where(mask[:L, :L] == 0.0, NEG_INF, att)
    att = jax.nn.softmax(att, axis=3)
    att = att @ kh
    att = att.transpose(0, 2, 1, 3).reshape(B, L, D)
    return att @ params["w_proj"] + params["b_proj"]


# ---------------------------------------------------------------------------
if __name__ == "__main__":
    d_model = 32
    n_heads = 4
    block_size = 8
    B, L = 2, 8

    key = jax.random.PRNGKey(0)
    kx, kp = jax.random.split(key)
    x = jax.random.normal(kx, (B, L, d_model), jnp.float32)
    params = init_params(kp, d_model)

    out = attention_forward(x, params, n_heads)
    out = jax.block_until_ready(out)

    mask = jnp.tril(jnp.ones((block_size, block_size), jnp.float32))
    ref = reference_forward(x, params, n_heads, mask)
    assert out.shape == (B, L, d_model)
    # Tolerance covers the EUP approx reciprocal in the softmax denominator.
    assert jnp.allclose(out, ref, atol=2e-3, rtol=2e-3), "mismatch vs reference"

    print("KERNEL_OK")
</pallas_src>

<mosaic_0001>
module attributes {stable_mosaic.version = 11 : i64} {
  func.func @_fused_attention_kernel(%arg0: i32, %arg1: memref<8x32xf32, #tpu.memory_space<vmem>>, %arg2: memref<4x32x8xf32, #tpu.memory_space<vmem>>, %arg3: memref<4x1x8xf32, #tpu.memory_space<vmem>>, %arg4: memref<4x8x32xf32, #tpu.memory_space<vmem>>, %arg5: memref<1x32xf32, #tpu.memory_space<vmem>>, %arg6: memref<8x32xf32, #tpu.memory_space<vmem>>) attributes {dimension_semantics = [#tpu.dimension_semantics<parallel>], iteration_bounds = array<i64: 2>, scalar_prefetch = 0 : i64, scratch_operands = 0 : i64, tpu.core_type = #tpu.core_type<tc>, window_params = [{transform_indices = @transform_0, window_bounds = array<i64: 8, 32>}, {pipeline_mode = #tpu.pipeline_mode<synchronous>, transform_indices = @transform_1, window_bounds = array<i64: 4, 32, 8>}, {pipeline_mode = #tpu.pipeline_mode<synchronous>, transform_indices = @transform_2, window_bounds = array<i64: 4, 1, 8>}, {pipeline_mode = #tpu.pipeline_mode<synchronous>, transform_indices = @transform_3, window_bounds = array<i64: 4, 8, 32>}, {pipeline_mode = #tpu.pipeline_mode<synchronous>, transform_indices = @transform_4, window_bounds = array<i64: 1, 32>}, {transform_indices = @transform_5, window_bounds = array<i64: 8, 32>}]} {
    %c0 = arith.constant 0 : index
    %c0_0 = arith.constant 0 : index
    %0 = vector.load %arg1[%c0, %c0_0] : memref<8x32xf32, #tpu.memory_space<vmem>>, vector<8x32xf32>
    %1 = vector.shape_cast %0 : vector<8x32xf32> to vector<1x8x32xf32>
    %2 = vector.shape_cast %1 : vector<1x8x32xf32> to vector<1x8x32xf32>
    %3 = vector.broadcast %2 : vector<1x8x32xf32> to vector<4x8x32xf32>
    %c0_1 = arith.constant 0 : index
    %c0_2 = arith.constant 0 : index
    %c0_3 = arith.constant 0 : index
    %4 = vector.load %arg2[%c0_1, %c0_2, %c0_3] : memref<4x32x8xf32, #tpu.memory_space<vmem>>, vector<4x32x8xf32>
    "tpu.trace_start"() <{level = 10 : i32, message = "hld,hdf->hlf"}> : () -> ()
    %cst = arith.constant dense<0.000000e+00> : vector<4x8x8xf32>
    %5 = tpu.matmul %3, %4, %cst {dimension_numbers = #tpu.dot_dimension_numbers<[2], [1], [1], [2], [0, 0, 0, 1, 1, 2], [0], [0]>} : vector<4x8x32xf32>, vector<4x32x8xf32>, vector<4x8x8xf32> -> vector<4x8x8xf32>
    "tpu.trace_stop"() : () -> ()
    %c0_4 = arith.constant 0 : index
    %c0_5 = arith.constant 0 : index
    %c0_6 = arith.constant 0 : index
    %6 = vector.load %arg3[%c0_4, %c0_5, %c0_6] : memref<4x1x8xf32, #tpu.memory_space<vmem>>, vector<4x1x8xf32>
    %7 = vector.broadcast %6 : vector<4x1x8xf32> to vector<4x8x8xf32>
    %8 = arith.addf %5, %7 : vector<4x8x8xf32>
    %cst_7 = arith.constant 0.353553385 : f32
    %9 = vector.broadcast %cst_7 : f32 to vector<4x8x8xf32>
    %10 = arith.mulf %8, %9 : vector<4x8x8xf32>
    "tpu.trace_start"() <{level = 10 : i32, message = "hqd,hkd->hqk"}> : () -> ()
    %cst_8 = arith.constant dense<0.000000e+00> : vector<4x8x8xf32>
    %11 = tpu.matmul %10, %8, %cst_8 {dimension_numbers = #tpu.dot_dimension_numbers<[2], [2], [1], [1], [0, 0, 0, 1, 1, 1], [0], [0]>} : vector<4x8x8xf32>, vector<4x8x8xf32>, vector<4x8x8xf32> -> vector<4x8x8xf32>
    "tpu.trace_stop"() : () -> ()
    %12 = tpu.iota {dimensions = array<i32: 0>} : vector<8x8xi32>
    %13 = tpu.iota {dimensions = array<i32: 1>} : vector<8x8xi32>
    %14 = arith.cmpi sle, %13, %12 : vector<8x8xi32>
    %15 = vector.shape_cast %14 : vector<8x8xi1> to vector<1x8x8xi1>
    %cst_9 = arith.constant -1.000000e+09 : f32
    %16 = vector.shape_cast %15 : vector<1x8x8xi1> to vector<1x8x8xi1>
    %17 = vector.broadcast %16 : vector<1x8x8xi1> to vector<4x8x8xi1>
    %18 = vector.broadcast %cst_9 : f32 to vector<4x8x8xf32>
    %19 = arith.select %17, %11, %18 : vector<4x8x8xi1>, vector<4x8x8xf32>
    %cst_10 = arith.constant dense<0xFF800000> : vector<4x8xf32>
    %20 = vector.multi_reduction <maximumf>, %19, %cst_10 [2] : vector<4x8x8xf32> to vector<4x8xf32>
    %21 = vector.shape_cast %20 : vector<4x8xf32> to vector<4x8x1xf32>
    %22 = vector.broadcast %21 : vector<4x8x1xf32> to vector<4x8x8xf32>
    %23 = arith.subf %19, %22 : vector<4x8x8xf32>
    %24 = math.exp %23 : vector<4x8x8xf32>
    %cst_11 = arith.constant dense<0.000000e+00> : vector<4x8xf32>
    %25 = vector.multi_reduction <add>, %24, %cst_11 [2] : vector<4x8x8xf32> to vector<4x8xf32>
    %26 = vector.shape_cast %25 : vector<4x8xf32> to vector<4x8x1xf32>
    %27 = tpu.reciprocal %26 {approx = true} : vector<4x8x1xf32> -> vector<4x8x1xf32>
    %28 = vector.broadcast %27 : vector<4x8x1xf32> to vector<4x8x8xf32>
    %29 = arith.mulf %24, %28 : vector<4x8x8xf32>
    "tpu.trace_start"() <{level = 10 : i32, message = "hqk,hkd->hqd"}> : () -> ()
    %cst_12 = arith.constant dense<0.000000e+00> : vector<4x8x8xf32>
    %30 = tpu.matmul %29, %8, %cst_12 {dimension_numbers = #tpu.dot_dimension_numbers<[2], [1], [1], [2], [0, 0, 0, 1, 1, 2], [0], [0]>} : vector<4x8x8xf32>, vector<4x8x8xf32>, vector<4x8x8xf32> -> vector<4x8x8xf32>
    "tpu.trace_stop"() : () -> ()
    %c0_13 = arith.constant 0 : index
    %c0_14 = arith.constant 0 : index
    %c0_15 = arith.constant 0 : index
    %31 = vector.load %arg4[%c0_13, %c0_14, %c0_15] : memref<4x8x32xf32, #tpu.memory_space<vmem>>, vector<4x8x32xf32>
    "tpu.trace_start"() <{level = 10 : i32, message = "hqd,hdf->hqf"}> : () -> ()
    %cst_16 = arith.constant dense<0.000000e+00> : vector<4x8x32xf32>
    %32 = tpu.matmul %30, %31, %cst_16 {dimension_numbers = #tpu.dot_dimension_numbers<[2], [1], [1], [2], [0, 0, 0, 1, 1, 2], [0], [0]>} : vector<4x8x8xf32>, vector<4x8x32xf32>, vector<4x8x32xf32> -> vector<4x8x32xf32>
    "tpu.trace_stop"() : () -> ()
    %cst_17 = arith.constant dense<0.000000e+00> : vector<8x32xf32>
    %33 = vector.multi_reduction <add>, %32, %cst_17 [0] : vector<4x8x32xf32> to vector<8x32xf32>
    %c0_18 = arith.constant 0 : index
    %c0_19 = arith.constant 0 : index
    %34 = vector.load %arg5[%c0_18, %c0_19] : memref<1x32xf32, #tpu.memory_space<vmem>>, vector<1x32xf32>
    %35 = vector.broadcast %34 : vector<1x32xf32> to vector<8x32xf32>
    %36 = arith.addf %33, %35 : vector<8x32xf32>
    %c0_20 = arith.constant 0 : index
    %c0_21 = arith.constant 0 : index
    %37 = vector.load %arg6[%c0_20, %c0_21] : memref<8x32xf32, #tpu.memory_space<vmem>>, vector<8x32xf32>
    tpu.vector_store %arg6[%c0_20, %c0_21], %36 {strides = array<i32>} : memref<8x32xf32, #tpu.memory_space<vmem>>, vector<8x32xf32>,
    return
  }
  func.func @transform_0(%arg0: i32) -> (i32, i32) {
    %c0_i32 = arith.constant 0 : i32
    %c0_i32_0 = arith.constant 0 : i32
    return %arg0, %c0_i32 : i32, i32
  }
  func.func @transform_1(%arg0: i32) -> (i32, i32, i32) {
    %c0_i32 = arith.constant 0 : i32
    %c0_i32_0 = arith.constant 0 : i32
    %c0_i32_1 = arith.constant 0 : i32
    %c0_i32_2 = arith.constant 0 : i32
    return %c0_i32, %c0_i32_0, %c0_i32_1 : i32, i32, i32
  }
  func.func @transform_2(%arg0: i32) -> (i32, i32, i32) {
    %c0_i32 = arith.constant 0 : i32
    %c0_i32_0 = arith.constant 0 : i32
    %c0_i32_1 = arith.constant 0 : i32
    %c0_i32_2 = arith.constant 0 : i32
    return %c0_i32, %c0_i32_0, %c0_i32_1 : i32, i32, i32
  }
  func.func @transform_3(%arg0: i32) -> (i32, i32, i32) {
    %c0_i32 = arith.constant 0 : i32
    %c0_i32_0 = arith.constant 0 : i32
    %c0_i32_1 = arith.constant 0 : i32
    %c0_i32_2 = arith.constant 0 : i32
    return %c0_i32, %c0_i32_0, %c0_i32_1 : i32, i32, i32
  }
  func.func @transform_4(%arg0: i32) -> (i32, i32) {
    %c0_i32 = arith.constant 0 : i32
    %c0_i32_0 = arith.constant 0 : i32
    %c0_i32_1 = arith.constant 0 : i32
    return %c0_i32, %c0_i32_0 : i32, i32
  }
  func.func @transform_5(%arg0: i32) -> (i32, i32) {
    %c0_i32 = arith.constant 0 : i32
    %c0_i32_0 = arith.constant 0 : i32
    return %arg0, %c0_i32 : i32, i32
  }
}

</mosaic_0001>

<llo_original>
// kernel: tpu_custom_call.1
$region0: #{tpu_custom_call.1}
  #allocation0 [shape = 'u32[]', space=smem, size = 0x4, offset = 0x4, fixed_abs, tag = 'smem constant byte address 0x4 - core index']
  #allocation1 [shape = 'u32[72,128]{1,0:T(1,128)}', space=vmem, size = 0x9000, scoped, tag = 'internal scratch']
  %s0 = inlined_call_operand.vmem [shape: f32[16,32], index: 0, kind: input, shape index: {}]
  %s1 = inlined_call_operand.vmem [shape: f32[4,32,8], index: 1, kind: input, shape index: {}]
  %s2 = inlined_call_operand.vmem [shape: f32[4,1,8], index: 2, kind: input, shape index: {}]
  %s3 = inlined_call_operand.vmem [shape: f32[4,8,32], index: 3, kind: input, shape index: {}]
  %s4 = inlined_call_operand.vmem [shape: f32[1,32], index: 4, kind: input, shape index: {}]
  %s5 = inlined_call_operand.hbm [shape: f32[16,32], index: 5, kind: output, shape index: {}]
  %s6 = sld [smem:[#allocation0]]
  $region53: #{tpu_custom_call.1} parent=0
    _
  %s8 = ssub.s32 1, %s6
  %s9 = scalar_select 0, %s8, %s6
  $region1: #{tpu_custom_call.1} parent=0
    #allocation2 [shape = 'u8[8192]{0}', space=vmem, size = 0x2000, scoped, tag = 'output window, operand 0']
    #allocation3 [shape = 's32[2]{0}', space=sflag, size = 0x8, scoped, tag = 'scoped memory for tpu_custom_call.1']
    %10 = vsyncpa [#allocation3], 0
    %s11 = scalar_lea.sflag [#allocation3], 1
    %12 = vsyncpa %s11, 0
    loop: start=0, step=1, limit=4
    $region2: #{tpu_custom_call.1} parent=1 // loop_pre_header
      _
    $region3: #{tpu_custom_call.1} parent=1 // loop_header
      %s14 = sphi 0, %s18
      %p15 = scmp.ge.s32.totalorder %s14, 4
      %s24 = sphi 0, %s26
      %s27 = sphi 0, %s24
      %s28 = sphi 0, %s27
      %s44 = sphi 0, %s28
      %s48 = sphi 0, %s48
      %s50 = sphi 0, %s48
      %s51 = sphi 0, %s50
      %s65 = sphi 0, %s51
      %s69 = sphi 0, %s69
      %s71 = sphi 0, %s69
      %s72 = sphi 0, %s71
      %s86 = sphi 0, %s72
      %s90 = sphi 0, %s90
      %s92 = sphi 0, %s90
      %s93 = sphi 0, %s92
      %s107 = sphi 0, %s93
      %s111 = sphi 0, %s111
      %s113 = sphi 0, %s111
      %s114 = sphi 0, %s113
      %s128 = sphi 0, %s114
      %s134 = sphi 0, %s136
      %s137 = sphi 0, %s134
      %s138 = sphi 0, %s137
      %s154 = sphi 0, %s138
    $region4: #{tpu_custom_call.1} parent=1 // loop_header_branch
      %17 = sbr.rel (%p15) target = $region8
    $region5: #{tpu_custom_call.1} parent=1 // loop_body
      %s19 = ssub.s32 %s14, 1
      %s20 = ssub.s32 %s14, 2
      %s21 = sadd.s32 %s14, 1
      %s22 = ssub.s32 %s14, %s21
      %p23 = scmp.eq.s32.totalorder %s22, 0
      %s25 = sadd.s32 %s24, 1
      %s26 = scalar_select %p23, %s24, %s25
      %p29 = pneg %p23
      %p30 = scmp.eq.s32.totalorder %s14, 1
      %p31 = por %p29, %p30
      %p32 = scmp.ne.s32.totalorder %s24, %s27
      %p33 = scmp.eq.s32.totalorder %s14, 0
      %p34 = por %p32, %p33
      %p35 = scmp.ne.s32.totalorder %s24, %s27
      %p36 = scmp.eq.s32.totalorder %s19, 1
      %p37 = por %p35, %p36
      %p38 = scmp.ne.s32.totalorder %s27, %s28
      %p39 = scmp.eq.s32.totalorder %s19, 0
      %p40 = por %p38, %p39
      %p41 = scmp.ne.s32.totalorder %s27, %s28
      %p42 = scmp.eq.s32.totalorder %s20, 1
      %p43 = por %p41, %p42
      %p45 = scmp.ne.s32.totalorder %s28, %s44
      %p46 = scmp.eq.s32.totalorder %s20, 0
      %p47 = por %p45, %p46
      %s49 = sadd.s32 %s48, 1
      %p52 = scmp.eq.s32.totalorder %s14, 1
      %p53 = scmp.ne.s32.totalorder %s48, %s50
      %p54 = scmp.eq.s32.totalorder %s14, 0
      %p55 = por %p53, %p54
      %p56 = scmp.ne.s32.totalorder %s48, %s50
      %p57 = scmp.eq.s32.totalorder %s19, 1
      %p58 = por %p56, %p57
      %p59 = scmp.ne.s32.totalorder %s50, %s51
      %p60 = scmp.eq.s32.totalorder %s19, 0
      %p61 = por %p59, %p60
      %p62 = scmp.ne.s32.totalorder %s50, %s51
      %p63 = scmp.eq.s32.totalorder %s20, 1
      %p64 = por %p62, %p63
      %p66 = scmp.ne.s32.totalorder %s51, %s65
      %p67 = scmp.eq.s32.totalorder %s20, 0
      %p68 = por %p66, %p67
      %s70 = sadd.s32 %s69, 1
      %p73 = scmp.eq.s32.totalorder %s14, 1
      %p74 = scmp.ne.s32.totalorder %s69, %s71
      %p75 = scmp.eq.s32.totalorder %s14, 0
      %p76 = por %p74, %p75
      %p77 = scmp.ne.s32.totalorder %s69, %s71
      %p78 = scmp.eq.s32.totalorder %s19, 1
      %p79 = por %p77, %p78
      %p80 = scmp.ne.s32.totalorder %s71, %s72
      %p81 = scmp.eq.s32.totalorder %s19, 0
      %p82 = por %p80, %p81
      %p83 = scmp.ne.s32.totalorder %s71, %s72
      %p84 = scmp.eq.s32.totalorder %s20, 1
      %p85 = por %p83, %p84
      %p87 = scmp.ne.s32.totalorder %s72, %s86
      %p88 = scmp.eq.s32.totalorder %s20, 0
      %p89 = por %p87, %p88
      %s91 = sadd.s32 %s90, 1
      %p94 = scmp.eq.s32.totalorder %s14, 1
      %p95 = scmp.ne.s32.totalorder %s90, %s92
      %p96 = scmp.eq.s32.totalorder %s14, 0
      %p97 = por %p95, %p96
      %p98 = scmp.ne.s32.totalorder %s90, %s92
      %p99 = scmp.eq.s32.totalorder %s19, 1
      %p100 = por %p98, %p99
      %p101 = scmp.ne.s32.totalorder %s92, %s93
      %p102 = scmp.eq.s32.totalorder %s19, 0
      %p103 = por %p101, %p102
      %p104 = scmp.ne.s32.totalorder %s92, %s93
      %p105 = scmp.eq.s32.totalorder %s20, 1
      %p106 = por %p104, %p105
      %p108 = scmp.ne.s32.totalorder %s93, %s107
      %p109 = scmp.eq.s32.totalorder %s20, 0
      %p110 = por %p108, %p109
      %s112 = sadd.s32 %s111, 1
      %p115 = scmp.eq.s32.totalorder %s14, 1
      %p116 = scmp.ne.s32.totalorder %s111, %s113
      %p117 = scmp.eq.s32.totalorder %s14, 0
      %p118 = por %p116, %p117
      %p119 = scmp.ne.s32.totalorder %s111, %s113
      %p120 = scmp.eq.s32.totalorder %s19, 1
      %p121 = por %p119, %p120
      %p122 = scmp.ne.s32.totalorder %s113, %s114
      %p123 = scmp.eq.s32.totalorder %s19, 0
      %p124 = por %p122, %p123
      %p125 = scmp.ne.s32.totalorder %s113, %s114
      %p126 = scmp.eq.s32.totalorder %s20, 1
      %p127 = por %p125, %p126
      %p129 = scmp.ne.s32.totalorder %s114, %s128
      %p130 = scmp.eq.s32.totalorder %s20, 0
      %p131 = por %p129, %p130
      %s132 = ssub.s32 %s14, %s21
      %p133 = scmp.eq.s32.totalorder %s132, 0
      %s135 = sadd.s32 %s134, 1
      %s136 = scalar_select %p133, %s134, %s135
      %p139 = pneg %p133
      %p140 = scmp.eq.s32.totalorder %s14, 1
      %p141 = por %p139, %p140
      %p142 = scmp.ne.s32.totalorder %s134, %s137
      %p143 = scmp.eq.s32.totalorder %s14, 0
      %p144 = por %p142, %p143
      %p145 = scmp.ne.s32.totalorder %s134, %s137
      %p146 = scmp.eq.s32.totalorder %s19, 1
      %p147 = por %p145, %p146
      %p148 = scmp.ne.s32.totalorder %s137, %s138
      %p149 = scmp.eq.s32.totalorder %s19, 0
      %p150 = por %p148, %p149
      %p151 = scmp.ne.s32.totalorder %s137, %s138
      %p152 = scmp.eq.s32.totalorder %s20, 1
      %p153 = por %p151, %p152
      %p155 = scmp.ne.s32.totalorder %s138, %s154
      %p156 = scmp.eq.s32.totalorder %s20, 0
      %p157 = por %p155, %p156
      %p158 = scmp.le.s32.totalorder 1, %s14
      %p159 = scmp.lt.s32.totalorder %s14, 3
      %p160 = pnand %p158, %p159
      %p161 = pneg %p160
      // Predicated region
      $region9: #{tpu_custom_call.1} parent=5 // pred_check
        _
      $region10: #{tpu_custom_call.1} parent=5 // pred_check_branch
        %163 = sbr.rel (%p160) target = $region12
      $region11: #{tpu_custom_call.1} parent=5 // pred_region
        %s164 = ssub.s32 %s14, 1
        // Predicated region
        $region13: #{tpu_custom_call.1} parent=11 // pred_check
          %p165 = pneg %p61
        $region14: #{tpu_custom_call.1} parent=11 // pred_check_branch
          %167 = sbr.rel (%p165) target = $region16
        $region15: #{tpu_custom_call.1} parent=11 // pred_region
          _
        $region16: #{tpu_custom_call.1} parent=11 // pred_fallthru
          _
        // Predicated region
        $region17: #{tpu_custom_call.1} parent=11 // pred_check
          %p168 = pneg %p82
        $region18: #{tpu_custom_call.1} parent=11 // pred_check_branch
          %170 = sbr.rel (%p168) target = $region20
        $region19: #{tpu_custom_call.1} parent=11 // pred_region
          _
        $region20: #{tpu_custom_call.1} parent=11 // pred_fallthru
          _
        // Predicated region
        $region21: #{tpu_custom_call.1} parent=11 // pred_check
          %p171 = pneg %p103
        $region22: #{tpu_custom_call.1} parent=11 // pred_check_branch
          %173 = sbr.rel (%p171) target = $region24
        $region23: #{tpu_custom_call.1} parent=11 // pred_region
          _
        $region24: #{tpu_custom_call.1} parent=11 // pred_fallthru
          _
        // Predicated region
        $region25: #{tpu_custom_call.1} parent=11 // pred_check
          %p174 = pneg %p124
        $region26: #{tpu_custom_call.1} parent=11 // pred_check_branch
          %176 = sbr.rel (%p174) target = $region28
        $region27: #{tpu_custom_call.1} parent=11 // pred_region
          _
        $region28: #{tpu_custom_call.1} parent=11 // pred_fallthru
          _
      $region12: #{tpu_custom_call.1} parent=5 // pred_fallthru
        _
      %p177 = scmp.lt.s32.totalorder %s14, 2
      // Predicated region
      $region29: #{tpu_custom_call.1} parent=5 // pred_check
        %p178 = pneg %p177
      $region30: #{tpu_custom_call.1} parent=5 // pred_check_branch
        %180 = sbr.rel (%p178) target = $region32
      $region31: #{tpu_custom_call.1} parent=5 // pred_region
        // Predicated region
        $region33: #{tpu_custom_call.1} parent=31 // pred_check
          %p181 = pneg %p34
        $region34: #{tpu_custom_call.1} parent=31 // pred_check_branch
          %183 = sbr.rel (%p181) target = $region36
        $region35: #{tpu_custom_call.1} parent=31 // pred_region
          %p184 = scmp.lt.s32.totalorder %s14, 1
          %s185 = scalar_select %p184, %s14, 1
          %s186 = smul.addr %s185, 8
          %s187 = scalar_lea.vmem %s0, %s186
        $region36: #{tpu_custom_call.1} parent=31 // pred_fallthru
          _
      $region32: #{tpu_custom_call.1} parent=5 // pred_fallthru
        _
      %p188 = scmp.le.s32.totalorder 1, %s14
      %p189 = scmp.lt.s32.totalorder %s14, 3
      %p190 = pnand %p188, %p189
      %p191 = pneg %p190
      // Predicated region
      $region37: #{tpu_custom_call.1} parent=5 // pred_check
        _
      $region38: #{tpu_custom_call.1} parent=5 // pred_check_branch
        %193 = sbr.rel (%p190) target = $region40
      $region39: #{tpu_custom_call.1} parent=5 // pred_region
        %s194 = ssub.s32 %s14, 1
        %p195 = scmp.lt.s32.totalorder %s19, 1
        %s196 = scalar_select %p195, %s19, 1
        %s197 = smul.addr %s196, 8
        %s198 = scalar_lea.vmem %s0, %s197
        %p199 = pneg %p40
        %p200 = pneg %p37
        %p201 = pneg %p61
        %p202 = pneg %p58
        %p203 = pneg %p82
        %p204 = pneg %p79
        %p205 = pneg %p103
        %p206 = pneg %p100
        %p207 = pneg %p124
        %p208 = pneg %p121
        %p209 = pneg %p150
        %p210 = pneg %p147
        %s211 = sand.u32 %s137, 1
        %s212 = scalar_lea.sflag [#allocation3], %s211
        %s213 = sand.u32 %s137, 1
        %s214 = smul.addr %s213, 8
        %s215 = scalar_lea.vmem [#allocation2], %s214
        %p216 = scmp.lt.s32.totalorder %s19, 1
        %s217 = scalar_select %p216, %s19, 1
        %s218 = smul.addr %s217, 8
        %s219 = scalar_lea.vmem %s0, %s218
        %v220 = vld [vmem:[%s219] sm:$0xff]
        %v221 = vld [vmem:[%s1] sm:$0xff]
        %v222 = vld [vmem:[%s1 + $0x8] sm:$0xff]
        %v223 = vld [vmem:[%s1 + $0x10] sm:$0xff]
        %v224 = vld [vmem:[%s1 + $0x18] sm:$0xff]
        %v225 = vld [vmem:[%s1 + $0x20] sm:$0xff]
        %v226 = vld [vmem:[%s1 + $0x28] sm:$0xff]
        %v227 = vld [vmem:[%s1 + $0x30] sm:$0xff]
        %v228 = vld [vmem:[%s1 + $0x38] sm:$0xff]
        %v229 = vld [vmem:[%s1 + $0x40] sm:$0xff]
        %v230 = vld [vmem:[%s1 + $0x48] sm:$0xff]
        %v231 = vld [vmem:[%s1 + $0x50] sm:$0xff]
        %v232 = vld [vmem:[%s1 + $0x58] sm:$0xff]
        %v233 = vld [vmem:[%s1 + $0x60] sm:$0xff]
        %v234 = vld [vmem:[%s1 + $0x68] sm:$0xff]
        %v235 = vld [vmem:[%s1 + $0x70] sm:$0xff]
        %v236 = vld [vmem:[%s1 + $0x78] sm:$0xff]
        %v237 = vld [vmem:[%s2] sm:$0x1]
        %v238 = vld [vmem:[%s2 + $0x1] sm:$0x1]
        %v239 = vld [vmem:[%s2 + $0x2] sm:$0x1]
        %v240 = vld [vmem:[%s2 + $0x3] sm:$0x1]
        %v245 = vperm.slane %v237, 0
        %v246 = vperm.slane %v238, 0
        %v247 = vperm.slane %v239, 0
        %v248 = vperm.slane %v240, 0
        %vm253 = vcmask 261120
        %v255 = vsel %vm253, %v220, 0
        %257 = vmatpush.msra.mxu0 0.0
        %258 = vmatpush.msra.mxu0 0.0
        %259 = vmatpush.msra.mxu0 0.0
        %260 = vmatpush.msra.mxu0 0.0
        %261 = vmatpush.msra.mxu0 0.0
        %262 = vmatpush.msra.mxu0 0.0
        %263 = vmatpush.msra.mxu0 0.0
        %264 = vmatpush.msra.mxu0 0.0
        %265 = vmatpush.msra.mxu0 0.0
        %266 = vmatpush.msra.mxu0 0.0
        %267 = vmatpush.msra.mxu0 0.0
        %268 = vmatpush.msra.mxu0 0.0
        %269 = vmatpush.msra.mxu0 %v224
        %270 = vmatpush.msra.mxu0 %v223
        %271 = vmatpush.msra.mxu0 %v222
        %272 = vmatpush.msra.mxu0 %v221
        %273 = vmatmul.f32.gmra.mxu0 %v255
        %v274 = vpop.f32.mrf.mxu0
        %v275 = vadd.f32 %v245, %v274
        %276 = vdwg.mxu0
        %277 = vmatpush.msra.mxu0 0.0
        %278 = vmatpush.msra.mxu0 0.0
        %279 = vmatpush.msra.mxu0 0.0
        %280 = vmatpush.msra.mxu0 0.0
        %281 = vmatpush.msra.mxu0 0.0
        %282 = vmatpush.msra.mxu0 0.0
        %283 = vmatpush.msra.mxu0 0.0
        %284 = vmatpush.msra.mxu0 0.0
        %285 = vmatpush.msra.mxu0 0.0
        %286 = vmatpush.msra.mxu0 0.0
        %287 = vmatpush.msra.mxu0 0.0
        %288 = vmatpush.msra.mxu0 0.0
        %289 = vmatpush.msra.mxu0 %v228
        %290 = vmatpush.msra.mxu0 %v227
        %291 = vmatpush.msra.mxu0 %v226
        %292 = vmatpush.msra.mxu0 %v225
        %293 = vmatmul.f32.gmra.mxu0 %v255
        %v294 = vpop.f32.mrf.mxu0
        %v295 = vadd.f32 %v246, %v294
        %296 = vdwg.mxu0
        %297 = vmatpush.msra.mxu0 0.0
        %298 = vmatpush.msra.mxu0 0.0
        %299 = vmatpush.msra.mxu0 0.0
        %300 = vmatpush.msra.mxu0 0.0
        %301 = vmatpush.msra.mxu0 0.0
        %302 = vmatpush.msra.mxu0 0.0
        %303 = vmatpush.msra.mxu0 0.0
        %304 = vmatpush.msra.mxu0 0.0
        %305 = vmatpush.msra.mxu0 0.0
        %306 = vmatpush.msra.mxu0 0.0
        %307 = vmatpush.msra.mxu0 0.0
        %308 = vmatpush.msra.mxu0 0.0
        %309 = vmatpush.msra.mxu0 %v232
        %310 = vmatpush.msra.mxu0 %v231
        %311 = vmatpush.msra.mxu0 %v230
        %312 = vmatpush.msra.mxu0 %v229
        %313 = vmatmul.f32.gmra.mxu0 %v255
        %v314 = vpop.f32.mrf.mxu0
        %v315 = vadd.f32 %v247, %v314
        %316 = vdwg.mxu0
        %317 = vmatpush.msra.mxu0 0.0
        %318 = vmatpush.msra.mxu0 0.0
        %319 = vmatpush.msra.mxu0 0.0
        %320 = vmatpush.msra.mxu0 0.0
        %321 = vmatpush.msra.mxu0 0.0
        %322 = vmatpush.msra.mxu0 0.0
        %323 = vmatpush.msra.mxu0 0.0
        %324 = vmatpush.msra.mxu0 0.0
        %325 = vmatpush.msra.mxu0 0.0
        %326 = vmatpush.msra.mxu0 0.0
        %327 = vmatpush.msra.mxu0 0.0
        %328 = vmatpush.msra.mxu0 0.0
        %329 = vmatpush.msra.mxu0 %v236
        %330 = vmatpush.msra.mxu0 %v235
        %331 = vmatpush.msra.mxu0 %v234
        %332 = vmatpush.msra.mxu0 %v233
        %333 = vmatmul.f32.gmra.mxu0 %v255
        %v334 = vpop.f32.mrf.mxu0
        %v335 = vadd.f32 %v248, %v334
        %336 = vdwg.mxu0
        %v337 = vmul.f32 %v275, 0.35355338
        %v338 = vmul.f32 %v295, 0.35355338
        %v339 = vmul.f32 %v315, 0.35355338
        %v340 = vmul.f32 %v335, 0.35355338
        %vm341 = vcmask 64512
        %v343 = vsel %vm341, %v337, 0
        %v346 = vsel %vm341, %v275, 0
        %348 = vmatpush.xpose.msra.mxu0 0.0
        %349 = vmatpush.xpose.msra.mxu0 0.0
        %350 = vmatpush.xpose.msra.mxu0 0.0
        %351 = vmatpush.xpose.msra.mxu0 0.0
        %352 = vmatpush.xpose.msra.mxu0 0.0
        %353 = vmatpush.xpose.msra.mxu0 0.0
        %354 = vmatpush.xpose.msra.mxu0 0.0
        %355 = vmatpush.xpose.msra.mxu0 0.0
        %356 = vmatpush.xpose.msra.mxu0 0.0
        %357 = vmatpush.xpose.msra.mxu0 0.0
        %358 = vmatpush.xpose.msra.mxu0 0.0
        %359 = vmatpush.xpose.msra.mxu0 0.0
        %360 = vmatpush.xpose.msra.mxu0 0.0
        %361 = vmatpush.xpose.msra.mxu0 0.0
        %362 = vmatpush.xpose.msra.mxu0 0.0
        %363 = vmatpush.xpose.msra.mxu0 %v346
        %364 = vmatmul.f32.gmra.mxu0 %v343
        %v365 = vpop.f32.mrf.mxu0
        %v366 = vadd.f32 0.0, %v365
        %367 = vdwg.mxu0
        %v369 = vsel %vm341, %v338, 0
        %v372 = vsel %vm341, %v295, 0
        %374 = vmatpush.xpose.msra.mxu0 0.0
        %375 = vmatpush.xpose.msra.mxu0 0.0
        %376 = vmatpush.xpose.msra.mxu0 0.0
        %377 = vmatpush.xpose.msra.mxu0 0.0
        %378 = vmatpush.xpose.msra.mxu0 0.0
        %379 = vmatpush.xpose.msra.mxu0 0.0
        %380 = vmatpush.xpose.msra.mxu0 0.0
        %381 = vmatpush.xpose.msra.mxu0 0.0
        %382 = vmatpush.xpose.msra.mxu0 0.0
        %383 = vmatpush.xpose.msra.mxu0 0.0
        %384 = vmatpush.xpose.msra.mxu0 0.0
        %385 = vmatpush.xpose.msra.mxu0 0.0
        %386 = vmatpush.xpose.msra.mxu0 0.0
        %387 = vmatpush.xpose.msra.mxu0 0.0
        %388 = vmatpush.xpose.msra.mxu0 0.0
        %389 = vmatpush.xpose.msra.mxu0 %v372
        %390 = vmatmul.f32.gmra.mxu0 %v369
        %v391 = vpop.f32.mrf.mxu0
        %v392 = vadd.f32 0.0, %v391
        %393 = vdwg.mxu0
        %v395 = vsel %vm341, %v339, 0
        %v398 = vsel %vm341, %v315, 0
        %400 = vmatpush.xpose.msra.mxu0 0.0
        %401 = vmatpush.xpose.msra.mxu0 0.0
        %402 = vmatpush.xpose.msra.mxu0 0.0
        %403 = vmatpush.xpose.msra.mxu0 0.0
        %404 = vmatpush.xpose.msra.mxu0 0.0
        %405 = vmatpush.xpose.msra.mxu0 0.0
        %406 = vmatpush.xpose.msra.mxu0 0.0
        %407 = vmatpush.xpose.msra.mxu0 0.0
        %408 = vmatpush.xpose.msra.mxu0 0.0
        %409 = vmatpush.xpose.msra.mxu0 0.0
        %410 = vmatpush.xpose.msra.mxu0 0.0
        %411 = vmatpush.xpose.msra.mxu0 0.0
        %412 = vmatpush.xpose.msra.mxu0 0.0
        %413 = vmatpush.xpose.msra.mxu0 0.0
        %414 = vmatpush.xpose.msra.mxu0 0.0
        %415 = vmatpush.xpose.msra.mxu0 %v398
        %416 = vmatmul.f32.gmra.mxu0 %v395
        %v417 = vpop.f32.mrf.mxu0
        %v418 = vadd.f32 0.0, %v417
        %419 = vdwg.mxu0
        %v421 = vsel %vm341, %v340, 0
        %v424 = vsel %vm341, %v335, 0
        %426 = vmatpush.xpose.msra.mxu0 0.0
        %427 = vmatpush.xpose.msra.mxu0 0.0
        %428 = vmatpush.xpose.msra.mxu0 0.0
        %429 = vmatpush.xpose.msra.mxu0 0.0
        %430 = vmatpush.xpose.msra.mxu0 0.0
        %431 = vmatpush.xpose.msra.mxu0 0.0
        %432 = vmatpush.xpose.msra.mxu0 0.0
        %433 = vmatpush.xpose.msra.mxu0 0.0
        %434 = vmatpush.xpose.msra.mxu0 0.0
        %435 = vmatpush.xpose.msra.mxu0 0.0
        %436 = vmatpush.xpose.msra.mxu0 0.0
        %437 = vmatpush.xpose.msra.mxu0 0.0
        %438 = vmatpush.xpose.msra.mxu0 0.0
        %439 = vmatpush.xpose.msra.mxu0 0.0
        %440 = vmatpush.xpose.msra.mxu0 0.0
        %441 = vmatpush.xpose.msra.mxu0 %v424
        %442 = vmatmul.f32.gmra.mxu0 %v421
        %v443 = vpop.f32.mrf.mxu0
        %v444 = vadd.f32 0.0, %v443
        %445 = vdwg.mxu0
        %v446 = vlaneseq
        %v447 = vshrl.u32 %v446, 7
        %v448 = vlaneseq
        %v449 = vand.u32 %v448, 127
        %vm450 = vcmp.le.s32.totalorder %v449, %v447
        %v451 = vsel %vm450, 1, 0
        %vm452 = vcmp.eq.s32.totalorder %v451, 1
        %v453 = vsel %vm452, %v366, -1e+09
        %v454 = vsel %vm452, %v392, -1e+09
        %v455 = vsel %vm452, %v418, -1e+09
        %v456 = vsel %vm452, %v444, -1e+09
        %v457 = vsel %vm341, %v453, -inf
        %458 = vmax.xlane.f32.xlu0 %v457
        %v459 = vpop.xlane.xlu0 %458
        %v460 = vsel %vm341, %v454, -inf
        %461 = vmax.xlane.f32.xlu0 %v460
        %v462 = vpop.xlane.xlu0 %461
        %v463 = vsel %vm341, %v455, -inf
        %464 = vmax.xlane.f32.xlu0 %v463
        %v465 = vpop.xlane.xlu0 %464
        %v466 = vsel %vm341, %v456, -inf
        %467 = vmax.xlane.f32.xlu0 %v466
        %v468 = vpop.xlane.xlu0 %467
        %v469 = vsub.f32 %v453, %v459
        %v470 = vsub.f32 %v454, %v462
        %v471 = vsub.f32 %v455, %v465
        %v472 = vsub.f32 %v456, %v468
        %v473 = vmul.f32 %v469, 1.442695
        %v474 = vpow.pop %v473
        %v475 = vmul.f32 %v470, 1.442695
        %v476 = vpow.pop %v475
        %v477 = vmul.f32 %v471, 1.442695
        %v478 = vpow.pop %v477
        %v479 = vmul.f32 %v472, 1.442695
        %v480 = vpow.pop %v479
        %v481 = vsel %vm341, %v474, 0.0
        %482 = vadd.xlane.f32.xlu0 %v481
        %v483 = vpop.xlane.xlu0 %482
        %v484 = vsel %vm341, %v476, 0.0
        %485 = vadd.xlane.f32.xlu0 %v484
        %v486 = vpop.xlane.xlu0 %485
        %v487 = vsel %vm341, %v478, 0.0
        %488 = vadd.xlane.f32.xlu0 %v487
        %v489 = vpop.xlane.xlu0 %488
        %v490 = vsel %vm341, %v480, 0.0
        %491 = vadd.xlane.f32.xlu0 %v490
        %v492 = vpop.xlane.xlu0 %491
        %v493 = vrcp.pop %v483
        %v494 = vrcp.pop %v486
        %v495 = vrcp.pop %v489
        %v496 = vrcp.pop %v492
        %v497 = vmul.f32 %v474, %v493
        %v498 = vmul.f32 %v476, %v494
        %v499 = vmul.f32 %v478, %v495
        %v500 = vmul.f32 %v480, %v496
        %v502 = vsel %vm341, %v497, 0
        %504 = vmatpush.msra.mxu0 0.0
        %505 = vmatpush.msra.mxu0 0.0
        %506 = vmatpush.msra.mxu0 0.0
        %507 = vmatpush.msra.mxu0 0.0
        %508 = vmatpush.msra.mxu0 0.0
        %509 = vmatpush.msra.mxu0 0.0
        %510 = vmatpush.msra.mxu0 0.0
        %511 = vmatpush.msra.mxu0 0.0
        %512 = vmatpush.msra.mxu0 0.0
        %513 = vmatpush.msra.mxu0 0.0
        %514 = vmatpush.msra.mxu0 0.0
        %515 = vmatpush.msra.mxu0 0.0
        %516 = vmatpush.msra.mxu0 0.0
        %517 = vmatpush.msra.mxu0 0.0
        %518 = vmatpush.msra.mxu0 0.0
        %519 = vmatpush.msra.mxu0 %v275
        %520 = vmatmul.f32.gmra.mxu0 %v502
        %v521 = vpop.f32.mrf.mxu0
        %v522 = vadd.f32 0.0, %v521
        %523 = vdwg.mxu0
        %v525 = vsel %vm341, %v498, 0
        %527 = vmatpush.msra.mxu0 0.0
        %528 = vmatpush.msra.mxu0 0.0
        %529 = vmatpush.msra.mxu0 0.0
        %530 = vmatpush.msra.mxu0 0.0
        %531 = vmatpush.msra.mxu0 0.0
        %532 = vmatpush.msra.mxu0 0.0
        %533 = vmatpush.msra.mxu0 0.0
        %534 = vmatpush.msra.mxu0 0.0
        %535 = vmatpush.msra.mxu0 0.0
        %536 = vmatpush.msra.mxu0 0.0
        %537 = vmatpush.msra.mxu0 0.0
        %538 = vmatpush.msra.mxu0 0.0
        %539 = vmatpush.msra.mxu0 0.0
        %540 = vmatpush.msra.mxu0 0.0
        %541 = vmatpush.msra.mxu0 0.0
        %542 = vmatpush.msra.mxu0 %v295
        %543 = vmatmul.f32.gmra.mxu0 %v525
        %v544 = vpop.f32.mrf.mxu0
        %v545 = vadd.f32 0.0, %v544
        %546 = vdwg.mxu0
        %v548 = vsel %vm341, %v499, 0
        %550 = vmatpush.msra.mxu0 0.0
        %551 = vmatpush.msra.mxu0 0.0
        %552 = vmatpush.msra.mxu0 0.0
        %553 = vmatpush.msra.mxu0 0.0
        %554 = vmatpush.msra.mxu0 0.0
        %555 = vmatpush.msra.mxu0 0.0
        %556 = vmatpush.msra.mxu0 0.0
        %557 = vmatpush.msra.mxu0 0.0
        %558 = vmatpush.msra.mxu0 0.0
        %559 = vmatpush.msra.mxu0 0.0
        %560 = vmatpush.msra.mxu0 0.0
        %561 = vmatpush.msra.mxu0 0.0
        %562 = vmatpush.msra.mxu0 0.0
        %563 = vmatpush.msra.mxu0 0.0
        %564 = vmatpush.msra.mxu0 0.0
        %565 = vmatpush.msra.mxu0 %v315
        %566 = vmatmul.f32.gmra.mxu0 %v548
        %v567 = vpop.f32.mrf.mxu0
        %v568 = vadd.f32 0.0, %v567
        %569 = vdwg.mxu0
        %v571 = vsel %vm341, %v500, 0
        %573 = vmatpush.msra.mxu0 0.0
        %574 = vmatpush.msra.mxu0 0.0
        %575 = vmatpush.msra.mxu0 0.0
        %576 = vmatpush.msra.mxu0 0.0
        %577 = vmatpush.msra.mxu0 0.0
        %578 = vmatpush.msra.mxu0 0.0
        %579 = vmatpush.msra.mxu0 0.0
        %580 = vmatpush.msra.mxu0 0.0
        %581 = vmatpush.msra.mxu0 0.0
        %582 = vmatpush.msra.mxu0 0.0
        %583 = vmatpush.msra.mxu0 0.0
        %584 = vmatpush.msra.mxu0 0.0
        %585 = vmatpush.msra.mxu0 0.0
        %586 = vmatpush.msra.mxu0 0.0
        %587 = vmatpush.msra.mxu0 0.0
        %588 = vmatpush.msra.mxu0 %v335
        %589 = vmatmul.f32.gmra.mxu0 %v571
        %v590 = vpop.f32.mrf.mxu0
        %v591 = vadd.f32 0.0, %v590
        %592 = vdwg.mxu0
        %v593 = vld [vmem:[%s3] sm:$0xff]
        %v594 = vld [vmem:[%s3 + $0x8] sm:$0xff]
        %v595 = vld [vmem:[%s3 + $0x10] sm:$0xff]
        %v596 = vld [vmem:[%s3 + $0x18] sm:$0xff]
        %v598 = vsel %vm341, %v522, 0
        %600 = vmatpush.msra.mxu0 0.0
        %601 = vmatpush.msra.mxu0 0.0
        %602 = vmatpush.msra.mxu0 0.0
        %603 = vmatpush.msra.mxu0 0.0
        %604 = vmatpush.msra.mxu0 0.0
        %605 = vmatpush.msra.mxu0 0.0
        %606 = vmatpush.msra.mxu0 0.0
        %607 = vmatpush.msra.mxu0 0.0
        %608 = vmatpush.msra.mxu0 0.0
        %609 = vmatpush.msra.mxu0 0.0
        %610 = vmatpush.msra.mxu0 0.0
        %611 = vmatpush.msra.mxu0 0.0
        %612 = vmatpush.msra.mxu0 0.0
        %613 = vmatpush.msra.mxu0 0.0
        %614 = vmatpush.msra.mxu0 0.0
        %615 = vmatpush.msra.mxu0 %v593
        %616 = vmatmul.f32.gmra.mxu0 %v598
        %v617 = vpop.f32.mrf.mxu0
        %v618 = vadd.f32 0.0, %v617
        %619 = vdwg.mxu0
        %v621 = vsel %vm341, %v545, 0
        %623 = vmatpush.msra.mxu0 0.0
        %624 = vmatpush.msra.mxu0 0.0
        %625 = vmatpush.msra.mxu0 0.0
        %626 = vmatpush.msra.mxu0 0.0
        %627 = vmatpush.msra.mxu0 0.0
        %628 = vmatpush.msra.mxu0 0.0
        %629 = vmatpush.msra.mxu0 0.0
        %630 = vmatpush.msra.mxu0 0.0
        %631 = vmatpush.msra.mxu0 0.0
        %632 = vmatpush.msra.mxu0 0.0
        %633 = vmatpush.msra.mxu0 0.0
        %634 = vmatpush.msra.mxu0 0.0
        %635 = vmatpush.msra.mxu0 0.0
        %636 = vmatpush.msra.mxu0 0.0
        %637 = vmatpush.msra.mxu0 0.0
        %638 = vmatpush.msra.mxu0 %v594
        %639 = vmatmul.f32.gmra.mxu0 %v621
        %v640 = vpop.f32.mrf.mxu0
        %v641 = vadd.f32 0.0, %v640
        %642 = vdwg.mxu0
        %v644 = vsel %vm341, %v568, 0
        %646 = vmatpush.msra.mxu0 0.0
        %647 = vmatpush.msra.mxu0 0.0
        %648 = vmatpush.msra.mxu0 0.0
        %649 = vmatpush.msra.mxu0 0.0
        %650 = vmatpush.msra.mxu0 0.0
        %651 = vmatpush.msra.mxu0 0.0
        %652 = vmatpush.msra.mxu0 0.0
        %653 = vmatpush.msra.mxu0 0.0
        %654 = vmatpush.msra.mxu0 0.0
        %655 = vmatpush.msra.mxu0 0.0
        %656 = vmatpush.msra.mxu0 0.0
        %657 = vmatpush.msra.mxu0 0.0
        %658 = vmatpush.msra.mxu0 0.0
        %659 = vmatpush.msra.mxu0 0.0
        %660 = vmatpush.msra.mxu0 0.0
        %661 = vmatpush.msra.mxu0 %v595
        %662 = vmatmul.f32.gmra.mxu0 %v644
        %v663 = vpop.f32.mrf.mxu0
        %v664 = vadd.f32 0.0, %v663
        %665 = vdwg.mxu0
        %v667 = vsel %vm341, %v591, 0
        %669 = vmatpush.msra.mxu0 0.0
        %670 = vmatpush.msra.mxu0 0.0
        %671 = vmatpush.msra.mxu0 0.0
        %672 = vmatpush.msra.mxu0 0.0
        %673 = vmatpush.msra.mxu0 0.0
        %674 = vmatpush.msra.mxu0 0.0
        %675 = vmatpush.msra.mxu0 0.0
        %676 = vmatpush.msra.mxu0 0.0
        %677 = vmatpush.msra.mxu0 0.0
        %678 = vmatpush.msra.mxu0 0.0
        %679 = vmatpush.msra.mxu0 0.0
        %680 = vmatpush.msra.mxu0 0.0
        %681 = vmatpush.msra.mxu0 0.0
        %682 = vmatpush.msra.mxu0 0.0
        %683 = vmatpush.msra.mxu0 0.0
        %684 = vmatpush.msra.mxu0 %v596
        %685 = vmatmul.f32.gmra.mxu0 %v667
        %v686 = vpop.f32.mrf.mxu0
        %v687 = vadd.f32 0.0, %v686
        %688 = vdwg.mxu0
        %v689 = vsel %vm253, %v618, 0.0
        %v690 = vsel %vm253, %v641, 0.0
        %v691 = vadd.f32 %v689, %v690
        %v692 = vsel %vm253, %v664, 0.0
        %v693 = vadd.f32 %v691, %v692
        %v694 = vsel %vm253, %v687, 0.0
        %v695 = vadd.f32 %v693, %v694
        %v696 = vld [vmem:[%s4] sm:$0x1]
        %v698 = vperm.slane %v696, 0
        %v700 = vadd.f32 %v695, %v698
        %701 = vst.msk [vmem:[%s215] sm:$0xff] %vm253, %v700
        %s702 = sand.u32 %s137, 1
        %s703 = scalar_lea.sflag [#allocation3], %s702
        %s704 = sand.u32 %s137, 1
        %s705 = smul.addr %s704, 8
        %s706 = scalar_lea.vmem [#allocation2], %s705
        // Predicated region
        $region41: #{tpu_custom_call.1} parent=39 // pred_check
          %p707 = pneg %p147
        $region42: #{tpu_custom_call.1} parent=39 // pred_check_branch
          %709 = sbr.rel (%p707) target = $region44
        $region43: #{tpu_custom_call.1} parent=39 // pred_region
          %711 = vsyncadd %s703, 0
          %s712 = smul.addr %s19, 8
          %s713 = scalar_lea.hbm %s5, %s712
          %s715 = sshll.u32 %s706, 4
          %s716 = int_to_ptr.vmem [resolvable:$true] %s715
          %s717 = sshll.u32 %s713, 4
          %s718 = int_to_ptr.hbm [resolvable:$true] %s717
          %720 = dma.vmem_to_hbm [thread:$0]  %s716, 128, %s718, %s703
        $region44: #{tpu_custom_call.1} parent=39 // pred_fallthru
          _
      $region40: #{tpu_custom_call.1} parent=5 // pred_fallthru
        _
      %p721 = scmp.le.s32.totalorder 2, %s14
      // Predicated region
      $region45: #{tpu_custom_call.1} parent=5 // pred_check
        %p722 = pneg %p721
      $region46: #{tpu_custom_call.1} parent=5 // pred_check_branch
        %724 = sbr.rel (%p722) target = $region48
      $region47: #{tpu_custom_call.1} parent=5 // pred_region
        %s725 = ssub.s32 %s14, 2
        // Predicated region
        $region49: #{tpu_custom_call.1} parent=47 // pred_check
          %p726 = pneg %p153
        $region50: #{tpu_custom_call.1} parent=47 // pred_check_branch
          %728 = sbr.rel (%p726) target = $region52
        $region51: #{tpu_custom_call.1} parent=47 // pred_region
          %s729 = sand.u32 %s138, 1
          %s730 = scalar_lea.sflag [#allocation3], %s729
          %s731 = sand.u32 %s138, 1
          %s732 = smul.addr %s731, 8
          %s733 = scalar_lea.vmem [#allocation2], %s732
          %735 = dma.done %s730, 128
        $region52: #{tpu_custom_call.1} parent=47 // pred_fallthru
          _
      $region48: #{tpu_custom_call.1} parent=5 // pred_fallthru
        _
    $region6: #{tpu_custom_call.1} parent=1 // loop_footer
      %s18 = sadd.s32 1, %s14
    $region7: #{tpu_custom_call.1} parent=1 // loop_footer_branch
      %13 = sbr.rel target = $region3
    $region8: #{tpu_custom_call.1} parent=1 // loop_exit
      _
    %736 = vsyncpa [#allocation3], 1
    %s737 = scalar_lea.sflag [#allocation3], 1
    %738 = vsyncpa %s737, 1

</llo_original>
